<compile_context>
chip_gen: v7x
topology: tpu7x:2x2x1
jax: 0.10.0
libtpu: 0.0.40
codegen_flags: <defaults>
</compile_context>

<pallas_src>
import functools
import math

import jax
import jax.numpy as jnp
from jax.experimental import pallas as pl
from jax.experimental.pallas import tpu as pltpu


def _round_up(a, b):
    return ((a + b - 1) // b) * b


def _gemm_bn_act_kernel(p_ref, w_ref, scale_ref, shift_ref, o_ref, *,
                        negative_slope):
    # (tm, K) @ (K, C_pad) on the MXU with f32 accumulation.
    acc = jnp.dot(p_ref[...], w_ref[...], preferred_element_type=jnp.float32)
    # Folded (inference) BatchNorm + conv bias: y = acc * scale + shift.
    y = acc * scale_ref[...] + shift_ref[...]
    # Activation: slope=0 -> ReLU, slope=1 -> identity, else PReLU/leaky.
    if negative_slope == 0.0:
        y = jnp.maximum(y, 0.0)
    elif negative_slope != 1.0:
        y = jnp.maximum(y, 0.0) + negative_slope * jnp.minimum(y, 0.0)
    o_ref[...] = y.astype(o_ref.dtype)


def _pick_tile_m(m, k, c_pad, tile_m, vmem_budget_bytes=36 * 1024 * 1024):
    """Largest tm (multiple of 8, <= tile_m) whose working set fits VMEM."""
    tm = min(tile_m, _round_up(m, 8))
    tm = max(8, _round_up(tm, 8))

    def vmem_bytes(t):
        # patch tile + out tile double-buffered; weights + scale/shift resident.
        return 4 * (2 * t * k + 2 * t * c_pad + k * c_pad + 2 * c_pad)

    while tm > 8 and vmem_bytes(tm) > vmem_budget_bytes:
        tm = max(8, _round_up(tm // 2, 8))
    return tm


def conv2d_bn_act(x, weight, bias, bn_gamma=None, bn_beta=None,
                  bn_mean=None, bn_var=None, *, stride=1, same_padding=True,
                  bn=True, nl='relu', prelu_alpha=0.25, bn_eps=1e-5,
                  tile_m=256):
    """Forward pass of the PyTorch Conv2d module (conv -> BN -> ReLU/PReLU).

    x:      (N, C_in, H, W)  float32, NCHW (PyTorch layout)
    weight: (C_out, C_in, KH, KW)
    bias:   (C_out,) or None
    bn_*:   BatchNorm2d affine params + running statistics (inference mode)
    """
    n, c_in, h, w = x.shape
    c_out, c_in_w, kh, kw = weight.shape
    assert c_in_w == c_in, "weight C_in mismatch"
    padding = (kh - 1) // 2 if same_padding else 0
    h_out = (h + 2 * padding - kh) // stride + 1
    w_out = (w + 2 * padding - kw) // stride + 1

    # ---- wrapper-side layout plumbing (XLA) ------------------------------
    # NCHW -> NHWC (channels last => lane dim), spatial zero padding.
    x_nhwc = jnp.transpose(x, (0, 2, 3, 1)).astype(jnp.float32)
    if padding:
        x_nhwc = jnp.pad(
            x_nhwc, ((0, 0), (padding, padding), (padding, padding), (0, 0)))

    # im2col: rows ordered (n, h_out, w_out), columns ordered (dh, dw, c_in).
    cols = []
    for dh in range(kh):
        for dw in range(kw):
            patch = jax.lax.slice(
                x_nhwc,
                (0, dh, dw, 0),
                (n, dh + (h_out - 1) * stride + 1,
                 dw + (w_out - 1) * stride + 1, c_in),
                (1, stride, stride, 1))
            cols.append(patch.reshape(n * h_out * w_out, c_in))
    patches = jnp.concatenate(cols, axis=1)          # (M, KH*KW*C_in)

    # Weight (C_out, C_in, KH, KW) -> (KH*KW*C_in, C_out), matching the
    # im2col column ordering above.
    w_flat = jnp.transpose(weight, (2, 3, 1, 0)).reshape(
        kh * kw * c_in, c_out).astype(jnp.float32)

    # Fold conv bias + inference BatchNorm into one per-channel scale/shift.
    b = bias if bias is not None else jnp.zeros((c_out,), jnp.float32)
    if bn:
        scale = bn_gamma / jnp.sqrt(bn_var + bn_eps)
        shift = scale * (b - bn_mean) + bn_beta
    else:
        scale = jnp.ones((c_out,), jnp.float32)
        shift = b
    scale = scale.reshape(1, c_out).astype(jnp.float32)
    shift = shift.reshape(1, c_out).astype(jnp.float32)

    if nl == 'relu':
        slope = 0.0
    elif nl == 'prelu':
        slope = float(prelu_alpha)
    else:
        slope = 1.0

    # ---- lane-dense padding of the channel axis --------------------------
    # Pad C_out to a multiple of 128 so the output block's lane dim is full:
    # unmasked `vst` stores instead of masked partial stores.  MXU work is
    # unchanged; padded columns (zero weights, zero shift) are sliced off.
    m = n * h_out * w_out
    k = kh * kw * c_in
    c_pad = _round_up(c_out, 128)
    if c_pad != c_out:
        w_flat = jnp.pad(w_flat, ((0, 0), (0, c_pad - c_out)))
        scale = jnp.pad(scale, ((0, 0), (0, c_pad - c_out)),
                        constant_values=1.0)
        shift = jnp.pad(shift, ((0, 0), (0, c_pad - c_out)))

    # ---- Pallas fused GEMM + BN + activation -----------------------------
    tm = _pick_tile_m(m, k, c_pad, tile_m)
    m_pad = _round_up(m, tm)
    if m_pad != m:
        patches = jnp.pad(patches, ((0, m_pad - m), (0, 0)))

    kernel = functools.partial(_gemm_bn_act_kernel, negative_slope=slope)
    out_flat = pl.pallas_call(
        kernel,
        out_shape=jax.ShapeDtypeStruct((m_pad, c_pad), jnp.float32),
        grid_spec=pltpu.PrefetchScalarGridSpec(
            num_scalar_prefetch=0,
            grid=(m_pad // tm,),
            in_specs=[
                pl.BlockSpec((tm, k), lambda i: (i, 0)),       # patch row tile
                pl.BlockSpec((k, c_pad), lambda i: (0, 0)),    # weights (resident)
                pl.BlockSpec((1, c_pad), lambda i: (0, 0)),    # BN scale
                pl.BlockSpec((1, c_pad), lambda i: (0, 0)),    # BN shift + bias
            ],
            out_specs=pl.BlockSpec((tm, c_pad), lambda i: (i, 0)),
        ),
        compiler_params=pltpu.CompilerParams(
            dimension_semantics=("parallel",),                 # 2 TCs on v7x
            vmem_limit_bytes=48 * 1024 * 1024),
    )(patches, w_flat, scale, shift)

    out = out_flat[:m, :c_out].reshape(n, h_out, w_out, c_out)
    return jnp.transpose(out, (0, 3, 1, 2))                    # back to NCHW


# --------------------------- pure-JAX reference ---------------------------
def _reference(x, weight, bias, gamma, beta, mean, var, *, stride, padding,
               eps, nl, prelu_alpha):
    y = jax.lax.conv_general_dilated(
        x, weight, window_strides=(stride, stride),
        padding=[(padding, padding), (padding, padding)],
        dimension_numbers=('NCHW', 'OIHW', 'NCHW'))
    y = y + bias[None, :, None, None]
    scale = gamma / jnp.sqrt(var + eps)
    y = scale[None, :, None, None] * (y - mean[None, :, None, None]) \
        + beta[None, :, None, None]
    if nl == 'relu':
        y = jnp.maximum(y, 0.0)
    elif nl == 'prelu':
        y = jnp.maximum(y, 0.0) + prelu_alpha * jnp.minimum(y, 0.0)
    return y


if __name__ == "__main__":
    # Small shapes consistent with the module: NCHW input, 3x3 same-padding
    # conv, BatchNorm2d (inference), ReLU.
    batch, c_in, c_out = 2, 4, 8
    h = w_sz = 16
    ksize, stride = 3, 1

    key = jax.random.PRNGKey(0)
    kx, kw_, kb, kg, kbeta, km, kv = jax.random.split(key, 7)

    x = jax.random.normal(kx, (batch, c_in, h, w_sz), dtype=jnp.float32)
    fan_in = c_in * ksize * ksize
    bound = 1.0 / math.sqrt(fan_in)
    weight = jax.random.uniform(kw_, (c_out, c_in, ksize, ksize),
                                dtype=jnp.float32, minval=-bound, maxval=bound)
    bias = jax.random.uniform(kb, (c_out,), dtype=jnp.float32,
                              minval=-bound, maxval=bound)
    gamma = jax.random.uniform(kg, (c_out,), dtype=jnp.float32,
                               minval=0.5, maxval=1.5)
    beta = 0.1 * jax.random.normal(kbeta, (c_out,), dtype=jnp.float32)
    running_mean = 0.1 * jax.random.normal(km, (c_out,), dtype=jnp.float32)
    running_var = jax.random.uniform(kv, (c_out,), dtype=jnp.float32,
                                     minval=0.5, maxval=1.5)

    out = conv2d_bn_act(x, weight, bias, gamma, beta, running_mean,
                        running_var, stride=stride, same_padding=True,
                        bn=True, nl='relu')
    out = jax.block_until_ready(out)

    padding = (ksize - 1) // 2
    ref = _reference(x, weight, bias, gamma, beta, running_mean, running_var,
                     stride=stride, padding=padding, eps=1e-5, nl='relu',
                     prelu_alpha=0.25)

    assert out.shape == (batch, c_out, h, w_sz)
    max_err = float(jnp.max(jnp.abs(out - ref)))
    assert jnp.allclose(out, ref, atol=1e-4, rtol=1e-4), max_err

    print("KERNEL_OK")
</pallas_src>

<mosaic_0001>
module attributes {stable_mosaic.version = 11 : i64} {
  func.func @_gemm_bn_act_kernel(%arg0: i32, %arg1: memref<256x36xf32, #tpu.memory_space<vmem>>, %arg2: memref<36x128xf32, #tpu.memory_space<vmem>>, %arg3: memref<1x128xf32, #tpu.memory_space<vmem>>, %arg4: memref<1x128xf32, #tpu.memory_space<vmem>>, %arg5: memref<256x128xf32, #tpu.memory_space<vmem>>) attributes {dimension_semantics = [#tpu.dimension_semantics<parallel>], iteration_bounds = array<i64: 2>, scalar_prefetch = 0 : i64, scratch_operands = 0 : i64, tpu.core_type = #tpu.core_type<tc>, window_params = [{transform_indices = @transform_0, window_bounds = array<i64: 256, 36>}, {pipeline_mode = #tpu.pipeline_mode<synchronous>, transform_indices = @transform_1, window_bounds = array<i64: 36, 128>}, {pipeline_mode = #tpu.pipeline_mode<synchronous>, transform_indices = @transform_2, window_bounds = array<i64: 1, 128>}, {pipeline_mode = #tpu.pipeline_mode<synchronous>, transform_indices = @transform_3, window_bounds = array<i64: 1, 128>}, {transform_indices = @transform_4, window_bounds = array<i64: 256, 128>}]} {
    %c0 = arith.constant 0 : index
    %c0_0 = arith.constant 0 : index
    %0 = vector.load %arg1[%c0, %c0_0] : memref<256x36xf32, #tpu.memory_space<vmem>>, vector<256x36xf32>
    %c0_1 = arith.constant 0 : index
    %c0_2 = arith.constant 0 : index
    %1 = vector.load %arg2[%c0_1, %c0_2] : memref<36x128xf32, #tpu.memory_space<vmem>>, vector<36x128xf32>
    %cst = arith.constant dense<0.000000e+00> : vector<256x128xf32>
    %2 = tpu.matmul %0, %1, %cst {dimension_numbers = #tpu.dot_dimension_numbers<[1], [0], [0], [1], [0, 0, 1, 1], [], []>} : vector<256x36xf32>, vector<36x128xf32>, vector<256x128xf32> -> vector<256x128xf32>
    %c0_3 = arith.constant 0 : index
    %c0_4 = arith.constant 0 : index
    %3 = vector.load %arg3[%c0_3, %c0_4] : memref<1x128xf32, #tpu.memory_space<vmem>>, vector<1x128xf32>
    %4 = vector.broadcast %3 : vector<1x128xf32> to vector<256x128xf32>
    %5 = arith.mulf %2, %4 : vector<256x128xf32>
    %c0_5 = arith.constant 0 : index
    %c0_6 = arith.constant 0 : index
    %6 = vector.load %arg4[%c0_5, %c0_6] : memref<1x128xf32, #tpu.memory_space<vmem>>, vector<1x128xf32>
    %7 = vector.broadcast %6 : vector<1x128xf32> to vector<256x128xf32>
    %8 = arith.addf %5, %7 : vector<256x128xf32>
    %cst_7 = arith.constant 0.000000e+00 : f32
    %9 = vector.broadcast %cst_7 : f32 to vector<256x128xf32>
    %10 = arith.maximumf %8, %9 : vector<256x128xf32>
    %c0_8 = arith.constant 0 : index
    %c0_9 = arith.constant 0 : index
    %11 = vector.load %arg5[%c0_8, %c0_9] : memref<256x128xf32, #tpu.memory_space<vmem>>, vector<256x128xf32>
    tpu.vector_store %arg5[%c0_8, %c0_9], %10 {strides = array<i32>} : memref<256x128xf32, #tpu.memory_space<vmem>>, vector<256x128xf32>,
    return
  }
  func.func @transform_0(%arg0: i32) -> (i32, i32) {
    %c0_i32 = arith.constant 0 : i32
    %c0_i32_0 = arith.constant 0 : i32
    return %arg0, %c0_i32 : i32, i32
  }
  func.func @transform_1(%arg0: i32) -> (i32, i32) {
    %c0_i32 = arith.constant 0 : i32
    %c0_i32_0 = arith.constant 0 : i32
    %c0_i32_1 = arith.constant 0 : i32
    return %c0_i32, %c0_i32_0 : i32, i32
  }
  func.func @transform_2(%arg0: i32) -> (i32, i32) {
    %c0_i32 = arith.constant 0 : i32
    %c0_i32_0 = arith.constant 0 : i32
    %c0_i32_1 = arith.constant 0 : i32
    return %c0_i32, %c0_i32_0 : i32, i32
  }
  func.func @transform_3(%arg0: i32) -> (i32, i32) {
    %c0_i32 = arith.constant 0 : i32
    %c0_i32_0 = arith.constant 0 : i32
    %c0_i32_1 = arith.constant 0 : i32
    return %c0_i32, %c0_i32_0 : i32, i32
  }
  func.func @transform_4(%arg0: i32) -> (i32, i32) {
    %c0_i32 = arith.constant 0 : i32
    %c0_i32_0 = arith.constant 0 : i32
    return %arg0, %c0_i32 : i32, i32
  }
}

</mosaic_0001>

<llo_original>
// kernel: tpu_custom_call.1
$region0: #{tpu_custom_call.1}
  #allocation0 [shape = 'u32[]', space=smem, size = 0x4, offset = 0x4, fixed_abs, tag = 'smem constant byte address 0x4 - core index']
  #allocation1 [shape = 'u32[144,128]{1,0:T(1,128)}', space=vmem, size = 0x12000, scoped, tag = 'internal scratch']
  %s0 = inlined_call_operand.vmem [shape: f32[512,36], index: 0, kind: input, shape index: {}]
  %s1 = inlined_call_operand.vmem [shape: f32[36,128], index: 1, kind: input, shape index: {}]
  %s2 = inlined_call_operand.vmem [shape: f32[1,128], index: 2, kind: input, shape index: {}]
  %s3 = inlined_call_operand.vmem [shape: f32[1,128], index: 3, kind: input, shape index: {}]
  %s4 = inlined_call_operand.hbm [shape: f32[512,128], index: 4, kind: output, shape index: {}]
  %s5 = sld [smem:[#allocation0]]
  $region49: #{tpu_custom_call.1} parent=0
    _
  %s7 = ssub.s32 1, %s5
  %s8 = scalar_select 0, %s7, %s5
  $region1: #{tpu_custom_call.1} parent=0
    #allocation2 [shape = 'u8[262144]{0}', space=vmem, size = 0x40000, scoped, tag = 'output window, operand 0']
    #allocation3 [shape = 's32[2]{0}', space=sflag, size = 0x8, scoped, tag = 'scoped memory for tpu_custom_call.1']
    %9 = vsyncpa [#allocation3], 0
    %s10 = scalar_lea.sflag [#allocation3], 1
    %11 = vsyncpa %s10, 0
    loop: start=0, step=1, limit=4
    $region2: #{tpu_custom_call.1} parent=1 // loop_pre_header
      _
    $region3: #{tpu_custom_call.1} parent=1 // loop_header
      %s13 = sphi 0, %s17
      %p14 = scmp.ge.s32.totalorder %s13, 4
      %s23 = sphi 0, %s25
      %s26 = sphi 0, %s23
      %s27 = sphi 0, %s26
      %s43 = sphi 0, %s27
      %s47 = sphi 0, %s47
      %s49 = sphi 0, %s47
      %s50 = sphi 0, %s49
      %s64 = sphi 0, %s50
      %s68 = sphi 0, %s68
      %s70 = sphi 0, %s68
      %s71 = sphi 0, %s70
      %s85 = sphi 0, %s71
      %s89 = sphi 0, %s89
      %s91 = sphi 0, %s89
      %s92 = sphi 0, %s91
      %s106 = sphi 0, %s92
      %s112 = sphi 0, %s114
      %s115 = sphi 0, %s112
      %s116 = sphi 0, %s115
      %s132 = sphi 0, %s116
    $region4: #{tpu_custom_call.1} parent=1 // loop_header_branch
      %16 = sbr.rel (%p14) target = $region8
    $region5: #{tpu_custom_call.1} parent=1 // loop_body
      %s18 = ssub.s32 %s13, 1
      %s19 = ssub.s32 %s13, 2
      %s20 = sadd.s32 %s13, 1
      %s21 = ssub.s32 %s13, %s20
      %p22 = scmp.eq.s32.totalorder %s21, 0
      %s24 = sadd.s32 %s23, 1
      %s25 = scalar_select %p22, %s23, %s24
      %p28 = pneg %p22
      %p29 = scmp.eq.s32.totalorder %s13, 1
      %p30 = por %p28, %p29
      %p31 = scmp.ne.s32.totalorder %s23, %s26
      %p32 = scmp.eq.s32.totalorder %s13, 0
      %p33 = por %p31, %p32
      %p34 = scmp.ne.s32.totalorder %s23, %s26
      %p35 = scmp.eq.s32.totalorder %s18, 1
      %p36 = por %p34, %p35
      %p37 = scmp.ne.s32.totalorder %s26, %s27
      %p38 = scmp.eq.s32.totalorder %s18, 0
      %p39 = por %p37, %p38
      %p40 = scmp.ne.s32.totalorder %s26, %s27
      %p41 = scmp.eq.s32.totalorder %s19, 1
      %p42 = por %p40, %p41
      %p44 = scmp.ne.s32.totalorder %s27, %s43
      %p45 = scmp.eq.s32.totalorder %s19, 0
      %p46 = por %p44, %p45
      %s48 = sadd.s32 %s47, 1
      %p51 = scmp.eq.s32.totalorder %s13, 1
      %p52 = scmp.ne.s32.totalorder %s47, %s49
      %p53 = scmp.eq.s32.totalorder %s13, 0
      %p54 = por %p52, %p53
      %p55 = scmp.ne.s32.totalorder %s47, %s49
      %p56 = scmp.eq.s32.totalorder %s18, 1
      %p57 = por %p55, %p56
      %p58 = scmp.ne.s32.totalorder %s49, %s50
      %p59 = scmp.eq.s32.totalorder %s18, 0
      %p60 = por %p58, %p59
      %p61 = scmp.ne.s32.totalorder %s49, %s50
      %p62 = scmp.eq.s32.totalorder %s19, 1
      %p63 = por %p61, %p62
      %p65 = scmp.ne.s32.totalorder %s50, %s64
      %p66 = scmp.eq.s32.totalorder %s19, 0
      %p67 = por %p65, %p66
      %s69 = sadd.s32 %s68, 1
      %p72 = scmp.eq.s32.totalorder %s13, 1
      %p73 = scmp.ne.s32.totalorder %s68, %s70
      %p74 = scmp.eq.s32.totalorder %s13, 0
      %p75 = por %p73, %p74
      %p76 = scmp.ne.s32.totalorder %s68, %s70
      %p77 = scmp.eq.s32.totalorder %s18, 1
      %p78 = por %p76, %p77
      %p79 = scmp.ne.s32.totalorder %s70, %s71
      %p80 = scmp.eq.s32.totalorder %s18, 0
      %p81 = por %p79, %p80
      %p82 = scmp.ne.s32.totalorder %s70, %s71
      %p83 = scmp.eq.s32.totalorder %s19, 1
      %p84 = por %p82, %p83
      %p86 = scmp.ne.s32.totalorder %s71, %s85
      %p87 = scmp.eq.s32.totalorder %s19, 0
      %p88 = por %p86, %p87
      %s90 = sadd.s32 %s89, 1
      %p93 = scmp.eq.s32.totalorder %s13, 1
      %p94 = scmp.ne.s32.totalorder %s89, %s91
      %p95 = scmp.eq.s32.totalorder %s13, 0
      %p96 = por %p94, %p95
      %p97 = scmp.ne.s32.totalorder %s89, %s91
      %p98 = scmp.eq.s32.totalorder %s18, 1
      %p99 = por %p97, %p98
      %p100 = scmp.ne.s32.totalorder %s91, %s92
      %p101 = scmp.eq.s32.totalorder %s18, 0
      %p102 = por %p100, %p101
      %p103 = scmp.ne.s32.totalorder %s91, %s92
      %p104 = scmp.eq.s32.totalorder %s19, 1
      %p105 = por %p103, %p104
      %p107 = scmp.ne.s32.totalorder %s92, %s106
      %p108 = scmp.eq.s32.totalorder %s19, 0
      %p109 = por %p107, %p108
      %s110 = ssub.s32 %s13, %s20
      %p111 = scmp.eq.s32.totalorder %s110, 0
      %s113 = sadd.s32 %s112, 1
      %s114 = scalar_select %p111, %s112, %s113
      %p117 = pneg %p111
      %p118 = scmp.eq.s32.totalorder %s13, 1
      %p119 = por %p117, %p118
      %p120 = scmp.ne.s32.totalorder %s112, %s115
      %p121 = scmp.eq.s32.totalorder %s13, 0
      %p122 = por %p120, %p121
      %p123 = scmp.ne.s32.totalorder %s112, %s115
      %p124 = scmp.eq.s32.totalorder %s18, 1
      %p125 = por %p123, %p124
      %p126 = scmp.ne.s32.totalorder %s115, %s116
      %p127 = scmp.eq.s32.totalorder %s18, 0
      %p128 = por %p126, %p127
      %p129 = scmp.ne.s32.totalorder %s115, %s116
      %p130 = scmp.eq.s32.totalorder %s19, 1
      %p131 = por %p129, %p130
      %p133 = scmp.ne.s32.totalorder %s116, %s132
      %p134 = scmp.eq.s32.totalorder %s19, 0
      %p135 = por %p133, %p134
      %p136 = scmp.le.s32.totalorder 1, %s13
      %p137 = scmp.lt.s32.totalorder %s13, 3
      %p138 = pnand %p136, %p137
      %p139 = pneg %p138
      // Predicated region
      $region9: #{tpu_custom_call.1} parent=5 // pred_check
        _
      $region10: #{tpu_custom_call.1} parent=5 // pred_check_branch
        %141 = sbr.rel (%p138) target = $region12
      $region11: #{tpu_custom_call.1} parent=5 // pred_region
        %s142 = ssub.s32 %s13, 1
        // Predicated region
        $region13: #{tpu_custom_call.1} parent=11 // pred_check
          %p143 = pneg %p60
        $region14: #{tpu_custom_call.1} parent=11 // pred_check_branch
          %145 = sbr.rel (%p143) target = $region16
        $region15: #{tpu_custom_call.1} parent=11 // pred_region
          _
        $region16: #{tpu_custom_call.1} parent=11 // pred_fallthru
          _
        // Predicated region
        $region17: #{tpu_custom_call.1} parent=11 // pred_check
          %p146 = pneg %p81
        $region18: #{tpu_custom_call.1} parent=11 // pred_check_branch
          %148 = sbr.rel (%p146) target = $region20
        $region19: #{tpu_custom_call.1} parent=11 // pred_region
          _
        $region20: #{tpu_custom_call.1} parent=11 // pred_fallthru
          _
        // Predicated region
        $region21: #{tpu_custom_call.1} parent=11 // pred_check
          %p149 = pneg %p102
        $region22: #{tpu_custom_call.1} parent=11 // pred_check_branch
          %151 = sbr.rel (%p149) target = $region24
        $region23: #{tpu_custom_call.1} parent=11 // pred_region
          _
        $region24: #{tpu_custom_call.1} parent=11 // pred_fallthru
          _
      $region12: #{tpu_custom_call.1} parent=5 // pred_fallthru
        _
      %p152 = scmp.lt.s32.totalorder %s13, 2
      // Predicated region
      $region25: #{tpu_custom_call.1} parent=5 // pred_check
        %p153 = pneg %p152
      $region26: #{tpu_custom_call.1} parent=5 // pred_check_branch
        %155 = sbr.rel (%p153) target = $region28
      $region27: #{tpu_custom_call.1} parent=5 // pred_region
        // Predicated region
        $region29: #{tpu_custom_call.1} parent=27 // pred_check
          %p156 = pneg %p33
        $region30: #{tpu_custom_call.1} parent=27 // pred_check_branch
          %158 = sbr.rel (%p156) target = $region32
        $region31: #{tpu_custom_call.1} parent=27 // pred_region
          %s159 = smul.u32 32, %s13
          %p160 = scmp.lt.s32.totalorder %s159, 63
          %s161 = scalar_select %p160, %s159, 63
          %s162 = smul.addr %s161, 8
          %s163 = scalar_lea.vmem %s0, %s162
          %s164 = smul.u32 32, %s13
        $region32: #{tpu_custom_call.1} parent=27 // pred_fallthru
          _
      $region28: #{tpu_custom_call.1} parent=5 // pred_fallthru
        _
      %p165 = scmp.le.s32.totalorder 1, %s13
      %p166 = scmp.lt.s32.totalorder %s13, 3
      %p167 = pnand %p165, %p166
      %p168 = pneg %p167
      // Predicated region
      $region33: #{tpu_custom_call.1} parent=5 // pred_check
        _
      $region34: #{tpu_custom_call.1} parent=5 // pred_check_branch
        %170 = sbr.rel (%p167) target = $region36
      $region35: #{tpu_custom_call.1} parent=5 // pred_region
        %s171 = ssub.s32 %s13, 1
        %s172 = smul.u32 32, %s18
        %p173 = scmp.lt.s32.totalorder %s172, 63
        %s174 = scalar_select %p173, %s172, 63
        %s175 = smul.addr %s174, 8
        %s176 = scalar_lea.vmem %s0, %s175
        %p177 = pneg %p39
        %p178 = pneg %p36
        %p179 = pneg %p60
        %p180 = pneg %p57
        %p181 = pneg %p81
        %p182 = pneg %p78
        %p183 = pneg %p102
        %p184 = pneg %p99
        %p185 = pneg %p128
        %p186 = pneg %p125
        %s187 = sand.u32 %s115, 1
        %s188 = scalar_lea.sflag [#allocation3], %s187
        %s189 = sand.u32 %s115, 1
        %s190 = smul.addr %s189, 256
        %s191 = scalar_lea.vmem [#allocation2], %s190
        %s192 = smul.u32 32, %s18
        %p193 = scmp.lt.s32.totalorder %s192, 63
        %s194 = scalar_select %p193, %s192, 63
        %s195 = smul.addr %s194, 8
        %s196 = scalar_lea.vmem %s0, %s195
        %s197 = smul.u32 32, %s18
        %s198 = smul.u32 32, %s18
        %v199 = vld [vmem:[%s196] sm:$0xff]
        %v200 = vld [vmem:[%s196 + $0x8] sm:$0xff]
        %v201 = vld [vmem:[%s196 + $0x10] sm:$0xff]
        %v202 = vld [vmem:[%s196 + $0x18] sm:$0xff]
        %v203 = vld [vmem:[%s196 + $0x20] sm:$0xff]
        %v204 = vld [vmem:[%s196 + $0x28] sm:$0xff]
        %v205 = vld [vmem:[%s196 + $0x30] sm:$0xff]
        %v206 = vld [vmem:[%s196 + $0x38] sm:$0xff]
        %v207 = vld [vmem:[%s196 + $0x40] sm:$0xff]
        %v208 = vld [vmem:[%s196 + $0x48] sm:$0xff]
        %v209 = vld [vmem:[%s196 + $0x50] sm:$0xff]
        %v210 = vld [vmem:[%s196 + $0x58] sm:$0xff]
        %v211 = vld [vmem:[%s196 + $0x60] sm:$0xff]
        %v212 = vld [vmem:[%s196 + $0x68] sm:$0xff]
        %v213 = vld [vmem:[%s196 + $0x70] sm:$0xff]
        %v214 = vld [vmem:[%s196 + $0x78] sm:$0xff]
        %v215 = vld [vmem:[%s196 + $0x80] sm:$0xff]
        %v216 = vld [vmem:[%s196 + $0x88] sm:$0xff]
        %v217 = vld [vmem:[%s196 + $0x90] sm:$0xff]
        %v218 = vld [vmem:[%s196 + $0x98] sm:$0xff]
        %v219 = vld [vmem:[%s196 + $0xa0] sm:$0xff]
        %v220 = vld [vmem:[%s196 + $0xa8] sm:$0xff]
        %v221 = vld [vmem:[%s196 + $0xb0] sm:$0xff]
        %v222 = vld [vmem:[%s196 + $0xb8] sm:$0xff]
        %v223 = vld [vmem:[%s196 + $0xc0] sm:$0xff]
        %v224 = vld [vmem:[%s196 + $0xc8] sm:$0xff]
        %v225 = vld [vmem:[%s196 + $0xd0] sm:$0xff]
        %v226 = vld [vmem:[%s196 + $0xd8] sm:$0xff]
        %v227 = vld [vmem:[%s196 + $0xe0] sm:$0xff]
        %v228 = vld [vmem:[%s196 + $0xe8] sm:$0xff]
        %v229 = vld [vmem:[%s196 + $0xf0] sm:$0xff]
        %v230 = vld [vmem:[%s196 + $0xf8] sm:$0xff]
        %v231 = vld [vmem:[%s1] sm:$0xff]
        %v232 = vld [vmem:[%s1 + $0x8] sm:$0xff]
        %v233 = vld [vmem:[%s1 + $0x10] sm:$0xff]
        %v234 = vld [vmem:[%s1 + $0x18] sm:$0xff]
        %v235 = vld [vmem:[%s1 + $0x20] sm:$0xf]
        %vm236 = vcmask 293888
        %v238 = vsel %vm236, %v199, 0
        %v241 = vsel %vm236, %v200, 0
        %v244 = vsel %vm236, %v201, 0
        %v247 = vsel %vm236, %v202, 0
        %v250 = vsel %vm236, %v203, 0
        %v253 = vsel %vm236, %v204, 0
        %v256 = vsel %vm236, %v205, 0
        %v259 = vsel %vm236, %v206, 0
        %v262 = vsel %vm236, %v207, 0
        %v265 = vsel %vm236, %v208, 0
        %v268 = vsel %vm236, %v209, 0
        %v271 = vsel %vm236, %v210, 0
        %v274 = vsel %vm236, %v211, 0
        %v277 = vsel %vm236, %v212, 0
        %v280 = vsel %vm236, %v213, 0
        %v283 = vsel %vm236, %v214, 0
        %v286 = vsel %vm236, %v215, 0
        %v289 = vsel %vm236, %v216, 0
        %v292 = vsel %vm236, %v217, 0
        %v295 = vsel %vm236, %v218, 0
        %v298 = vsel %vm236, %v219, 0
        %v301 = vsel %vm236, %v220, 0
        %v304 = vsel %vm236, %v221, 0
        %v307 = vsel %vm236, %v222, 0
        %v310 = vsel %vm236, %v223, 0
        %v313 = vsel %vm236, %v224, 0
        %v316 = vsel %vm236, %v225, 0
        %v319 = vsel %vm236, %v226, 0
        %v322 = vsel %vm236, %v227, 0
        %v325 = vsel %vm236, %v228, 0
        %v328 = vsel %vm236, %v229, 0
        %v331 = vsel %vm236, %v230, 0
        %vm333 = vcmask 1043456
        %v335 = vsel %vm333, %v235, 0
        %337 = vmatprep.subr.mxu0 0.0
        %338 = vmatpush1.msra.mxu0 %v231
        %339 = vmatprep.subr.mxu0 0.0
        %340 = vmatpush1.msra.mxu0 %v232
        %341 = vmatprep.subr.mxu0 0.0
        %342 = vmatpush1.msra.mxu0 %v233
        %343 = vmatprep.subr.mxu0 0.0
        %344 = vmatpush1.msra.mxu0 %v234
        %345 = vmatprep.subr.mxu0 0.0
        %346 = vmatpush1.msra.mxu0 %v335
        %347 = vmatprep.subr.mxu0 0.0
        %348 = vmatpush1.msra.mxu0 0.0
        %349 = vmatprep.subr.mxu0 0.0
        %350 = vmatpush1.msra.mxu0 0.0
        %351 = vmatprep.subr.mxu0 0.0
        %352 = vmatpush1.msra.mxu0 0.0
        %353 = vmatprep.subr.mxu0 0.0
        %354 = vmatpush1.msra.mxu0 0.0
        %355 = vmatprep.subr.mxu0 0.0
        %356 = vmatpush1.msra.mxu0 0.0
        %357 = vmatprep.subr.mxu0 0.0
        %358 = vmatpush1.msra.mxu0 0.0
        %359 = vmatprep.subr.mxu0 0.0
        %360 = vmatpush1.msra.mxu0 0.0
        %361 = vmatprep.subr.mxu0 0.0
        %362 = vmatpush1.msra.mxu0 0.0
        %363 = vmatprep.subr.mxu0 0.0
        %364 = vmatpush1.msra.mxu0 0.0
        %365 = vmatprep.subr.mxu0 0.0
        %366 = vmatpush1.msra.mxu0 0.0
        %367 = vmatprep.subr.mxu0 0.0
        %368 = vmatpush1.msra.mxu0 0.0
        %369 = vmatprep.subr.mxu0 0.0
        %370 = vmatpush1.msra.mxu0 0.0
        %371 = vmatprep.subr.mxu0 0.0
        %372 = vmatpush1.msra.mxu0 0.0
        %373 = vmatprep.subr.mxu0 0.0
        %374 = vmatpush1.msra.mxu0 0.0
        %375 = vmatprep.subr.mxu0 0.0
        %376 = vmatpush1.msra.mxu0 0.0
        %377 = vmatprep.subr.mxu0 0.0
        %378 = vmatpush1.msra.mxu0 0.0
        %379 = vmatprep.subr.mxu0 0.0
        %380 = vmatpush1.msra.mxu0 0.0
        %381 = vmatprep.subr.mxu0 0.0
        %382 = vmatpush1.msra.mxu0 0.0
        %383 = vmatprep.subr.mxu0 0.0
        %384 = vmatpush1.msra.mxu0 0.0
        %385 = vmatprep.subr.mxu0 0.0
        %386 = vmatpush1.msra.mxu0 0.0
        %387 = vmatprep.subr.mxu0 0.0
        %388 = vmatpush1.msra.mxu0 0.0
        %389 = vmatprep.subr.mxu0 0.0
        %390 = vmatpush1.msra.mxu0 0.0
        %391 = vmatprep.subr.mxu0 0.0
        %392 = vmatpush1.msra.mxu0 0.0
        %393 = vmatprep.subr.mxu0 0.0
        %394 = vmatpush1.msra.mxu0 0.0
        %395 = vmatprep.subr.mxu0 0.0
        %396 = vmatpush1.msra.mxu0 0.0
        %397 = vmatprep.subr.mxu0 0.0
        %398 = vmatpush1.msra.mxu0 0.0
        %399 = vmatprep.subr.mxu0 0.0
        %400 = vmatpush1.msra.mxu0 0.0
        %401 = vmatprep.mubr.f32.mxu0 0.0
        %402 = vmatmul.mubr.f32.gmra.mrb[0].mxu0 %v238
        %v403 = vpop.f32.mrb[0].mxu0
        %v404 = vadd.f32 0.0, %v403
        %v405 = vpop.f32.mrb[0].mxu0
        %406 = vmatprep.mubr.f32.mxu0 0.0
        %407 = vmatmul.mubr.f32.gmra.mrb[0].mxu0 %v241
        %v408 = vpop.f32.mrb[0].mxu0
        %v409 = vadd.f32 0.0, %v408
        %v410 = vpop.f32.mrb[0].mxu0
        %411 = vmatprep.mubr.f32.mxu0 0.0
        %412 = vmatmul.mubr.f32.gmra.mrb[0].mxu0 %v244
        %v413 = vpop.f32.mrb[0].mxu0
        %v414 = vadd.f32 0.0, %v413
        %v415 = vpop.f32.mrb[0].mxu0
        %416 = vmatprep.mubr.f32.mxu0 0.0
        %417 = vmatmul.mubr.f32.gmra.mrb[0].mxu0 %v247
        %v418 = vpop.f32.mrb[0].mxu0
        %v419 = vadd.f32 0.0, %v418
        %v420 = vpop.f32.mrb[0].mxu0
        %421 = vmatprep.mubr.f32.mxu0 0.0
        %422 = vmatmul.mubr.f32.gmra.mrb[0].mxu0 %v250
        %v423 = vpop.f32.mrb[0].mxu0
        %v424 = vadd.f32 0.0, %v423
        %v425 = vpop.f32.mrb[0].mxu0
        %426 = vmatprep.mubr.f32.mxu0 0.0
        %427 = vmatmul.mubr.f32.gmra.mrb[0].mxu0 %v253
        %v428 = vpop.f32.mrb[0].mxu0
        %v429 = vadd.f32 0.0, %v428
        %v430 = vpop.f32.mrb[0].mxu0
        %431 = vmatprep.mubr.f32.mxu0 0.0
        %432 = vmatmul.mubr.f32.gmra.mrb[0].mxu0 %v256
        %v433 = vpop.f32.mrb[0].mxu0
        %v434 = vadd.f32 0.0, %v433
        %v435 = vpop.f32.mrb[0].mxu0
        %436 = vmatprep.mubr.f32.mxu0 0.0
        %437 = vmatmul.mubr.f32.gmra.mrb[0].mxu0 %v259
        %v438 = vpop.f32.mrb[0].mxu0
        %v439 = vadd.f32 0.0, %v438
        %v440 = vpop.f32.mrb[0].mxu0
        %441 = vmatprep.mubr.f32.mxu0 0.0
        %442 = vmatmul.mubr.f32.gmra.mrb[0].mxu0 %v262
        %v443 = vpop.f32.mrb[0].mxu0
        %v444 = vadd.f32 0.0, %v443
        %v445 = vpop.f32.mrb[0].mxu0
        %446 = vmatprep.mubr.f32.mxu0 0.0
        %447 = vmatmul.mubr.f32.gmra.mrb[0].mxu0 %v265
        %v448 = vpop.f32.mrb[0].mxu0
        %v449 = vadd.f32 0.0, %v448
        %v450 = vpop.f32.mrb[0].mxu0
        %451 = vmatprep.mubr.f32.mxu0 0.0
        %452 = vmatmul.mubr.f32.gmra.mrb[0].mxu0 %v268
        %v453 = vpop.f32.mrb[0].mxu0
        %v454 = vadd.f32 0.0, %v453
        %v455 = vpop.f32.mrb[0].mxu0
        %456 = vmatprep.mubr.f32.mxu0 0.0
        %457 = vmatmul.mubr.f32.gmra.mrb[0].mxu0 %v271
        %v458 = vpop.f32.mrb[0].mxu0
        %v459 = vadd.f32 0.0, %v458
        %v460 = vpop.f32.mrb[0].mxu0
        %461 = vmatprep.mubr.f32.mxu0 0.0
        %462 = vmatmul.mubr.f32.gmra.mrb[0].mxu0 %v274
        %v463 = vpop.f32.mrb[0].mxu0
        %v464 = vadd.f32 0.0, %v463
        %v465 = vpop.f32.mrb[0].mxu0
        %466 = vmatprep.mubr.f32.mxu0 0.0
        %467 = vmatmul.mubr.f32.gmra.mrb[0].mxu0 %v277
        %v468 = vpop.f32.mrb[0].mxu0
        %v469 = vadd.f32 0.0, %v468
        %v470 = vpop.f32.mrb[0].mxu0
        %471 = vmatprep.mubr.f32.mxu0 0.0
        %472 = vmatmul.mubr.f32.gmra.mrb[0].mxu0 %v280
        %v473 = vpop.f32.mrb[0].mxu0
        %v474 = vadd.f32 0.0, %v473
        %v475 = vpop.f32.mrb[0].mxu0
        %476 = vmatprep.mubr.f32.mxu0 0.0
        %477 = vmatmul.mubr.f32.gmra.mrb[0].mxu0 %v283
        %v478 = vpop.f32.mrb[0].mxu0
        %v479 = vadd.f32 0.0, %v478
        %v480 = vpop.f32.mrb[0].mxu0
        %481 = vmatprep.mubr.f32.mxu0 0.0
        %482 = vmatmul.mubr.f32.gmra.mrb[0].mxu0 %v286
        %v483 = vpop.f32.mrb[0].mxu0
        %v484 = vadd.f32 0.0, %v483
        %v485 = vpop.f32.mrb[0].mxu0
        %486 = vmatprep.mubr.f32.mxu0 0.0
        %487 = vmatmul.mubr.f32.gmra.mrb[0].mxu0 %v289
        %v488 = vpop.f32.mrb[0].mxu0
        %v489 = vadd.f32 0.0, %v488
        %v490 = vpop.f32.mrb[0].mxu0
        %491 = vmatprep.mubr.f32.mxu0 0.0
        %492 = vmatmul.mubr.f32.gmra.mrb[0].mxu0 %v292
        %v493 = vpop.f32.mrb[0].mxu0
        %v494 = vadd.f32 0.0, %v493
        %v495 = vpop.f32.mrb[0].mxu0
        %496 = vmatprep.mubr.f32.mxu0 0.0
        %497 = vmatmul.mubr.f32.gmra.mrb[0].mxu0 %v295
        %v498 = vpop.f32.mrb[0].mxu0
        %v499 = vadd.f32 0.0, %v498
        %v500 = vpop.f32.mrb[0].mxu0
        %501 = vmatprep.mubr.f32.mxu0 0.0
        %502 = vmatmul.mubr.f32.gmra.mrb[0].mxu0 %v298
        %v503 = vpop.f32.mrb[0].mxu0
        %v504 = vadd.f32 0.0, %v503
        %v505 = vpop.f32.mrb[0].mxu0
        %506 = vmatprep.mubr.f32.mxu0 0.0
        %507 = vmatmul.mubr.f32.gmra.mrb[0].mxu0 %v301
        %v508 = vpop.f32.mrb[0].mxu0
        %v509 = vadd.f32 0.0, %v508
        %v510 = vpop.f32.mrb[0].mxu0
        %511 = vmatprep.mubr.f32.mxu0 0.0
        %512 = vmatmul.mubr.f32.gmra.mrb[0].mxu0 %v304
        %v513 = vpop.f32.mrb[0].mxu0
        %v514 = vadd.f32 0.0, %v513
        %v515 = vpop.f32.mrb[0].mxu0
        %516 = vmatprep.mubr.f32.mxu0 0.0
        %517 = vmatmul.mubr.f32.gmra.mrb[0].mxu0 %v307
        %v518 = vpop.f32.mrb[0].mxu0
        %v519 = vadd.f32 0.0, %v518
        %v520 = vpop.f32.mrb[0].mxu0
        %521 = vmatprep.mubr.f32.mxu0 0.0
        %522 = vmatmul.mubr.f32.gmra.mrb[0].mxu0 %v310
        %v523 = vpop.f32.mrb[0].mxu0
        %v524 = vadd.f32 0.0, %v523
        %v525 = vpop.f32.mrb[0].mxu0
        %526 = vmatprep.mubr.f32.mxu0 0.0
        %527 = vmatmul.mubr.f32.gmra.mrb[0].mxu0 %v313
        %v528 = vpop.f32.mrb[0].mxu0
        %v529 = vadd.f32 0.0, %v528
        %v530 = vpop.f32.mrb[0].mxu0
        %531 = vmatprep.mubr.f32.mxu0 0.0
        %532 = vmatmul.mubr.f32.gmra.mrb[0].mxu0 %v316
        %v533 = vpop.f32.mrb[0].mxu0
        %v534 = vadd.f32 0.0, %v533
        %v535 = vpop.f32.mrb[0].mxu0
        %536 = vmatprep.mubr.f32.mxu0 0.0
        %537 = vmatmul.mubr.f32.gmra.mrb[0].mxu0 %v319
        %v538 = vpop.f32.mrb[0].mxu0
        %v539 = vadd.f32 0.0, %v538
        %v540 = vpop.f32.mrb[0].mxu0
        %541 = vmatprep.mubr.f32.mxu0 0.0
        %542 = vmatmul.mubr.f32.gmra.mrb[0].mxu0 %v322
        %v543 = vpop.f32.mrb[0].mxu0
        %v544 = vadd.f32 0.0, %v543
        %v545 = vpop.f32.mrb[0].mxu0
        %546 = vmatprep.mubr.f32.mxu0 0.0
        %547 = vmatmul.mubr.f32.gmra.mrb[0].mxu0 %v325
        %v548 = vpop.f32.mrb[0].mxu0
        %v549 = vadd.f32 0.0, %v548
        %v550 = vpop.f32.mrb[0].mxu0
        %551 = vmatprep.mubr.f32.mxu0 0.0
        %552 = vmatmul.mubr.f32.gmra.mrb[0].mxu0 %v328
        %v553 = vpop.f32.mrb[0].mxu0
        %v554 = vadd.f32 0.0, %v553
        %v555 = vpop.f32.mrb[0].mxu0
        %556 = vmatprep.mubr.f32.mxu0 0.0
        %557 = vmatmul.mubr.f32.gmra.mrb[0].mxu0 %v331
        %v558 = vpop.f32.mrb[0].mxu0
        %v559 = vadd.f32 0.0, %v558
        %v560 = vpop.f32.mrb[0].mxu0
        %561 = vdwg.mxu0
        %v562 = vld [vmem:[%s2] sm:$0x1]
        %v564 = vlaneseq
        %v565 = vshrl.u32 %v564, 7
        %v566 = vsub.s32 0, %v565
        %v567 = vrot.slane %v562, %v566
        %v569 = vmul.f32 %v404, %v567
        %v570 = vmul.f32 %v409, %v567
        %v571 = vmul.f32 %v414, %v567
        %v572 = vmul.f32 %v419, %v567
        %v573 = vmul.f32 %v424, %v567
        %v574 = vmul.f32 %v429, %v567
        %v575 = vmul.f32 %v434, %v567
        %v576 = vmul.f32 %v439, %v567
        %v577 = vmul.f32 %v444, %v567
        %v578 = vmul.f32 %v449, %v567
        %v579 = vmul.f32 %v454, %v567
        %v580 = vmul.f32 %v459, %v567
        %v581 = vmul.f32 %v464, %v567
        %v582 = vmul.f32 %v469, %v567
        %v583 = vmul.f32 %v474, %v567
        %v584 = vmul.f32 %v479, %v567
        %v585 = vmul.f32 %v484, %v567
        %v586 = vmul.f32 %v489, %v567
        %v587 = vmul.f32 %v494, %v567
        %v588 = vmul.f32 %v499, %v567
        %v589 = vmul.f32 %v504, %v567
        %v590 = vmul.f32 %v509, %v567
        %v591 = vmul.f32 %v514, %v567
        %v592 = vmul.f32 %v519, %v567
        %v593 = vmul.f32 %v524, %v567
        %v594 = vmul.f32 %v529, %v567
        %v595 = vmul.f32 %v534, %v567
        %v596 = vmul.f32 %v539, %v567
        %v597 = vmul.f32 %v544, %v567
        %v598 = vmul.f32 %v549, %v567
        %v599 = vmul.f32 %v554, %v567
        %v600 = vmul.f32 %v559, %v567
        %v601 = vld [vmem:[%s3] sm:$0x1]
        %v603 = vlaneseq
        %v604 = vshrl.u32 %v603, 7
        %v605 = vsub.s32 0, %v604
        %v606 = vrot.slane %v601, %v605
        %v608 = vadd.f32 %v569, %v606
        %v609 = vadd.f32 %v570, %v606
        %v610 = vadd.f32 %v571, %v606
        %v611 = vadd.f32 %v572, %v606
        %v612 = vadd.f32 %v573, %v606
        %v613 = vadd.f32 %v574, %v606
        %v614 = vadd.f32 %v575, %v606
        %v615 = vadd.f32 %v576, %v606
        %v616 = vadd.f32 %v577, %v606
        %v617 = vadd.f32 %v578, %v606
        %v618 = vadd.f32 %v579, %v606
        %v619 = vadd.f32 %v580, %v606
        %v620 = vadd.f32 %v581, %v606
        %v621 = vadd.f32 %v582, %v606
        %v622 = vadd.f32 %v583, %v606
        %v623 = vadd.f32 %v584, %v606
        %v624 = vadd.f32 %v585, %v606
        %v625 = vadd.f32 %v586, %v606
        %v626 = vadd.f32 %v587, %v606
        %v627 = vadd.f32 %v588, %v606
        %v628 = vadd.f32 %v589, %v606
        %v629 = vadd.f32 %v590, %v606
        %v630 = vadd.f32 %v591, %v606
        %v631 = vadd.f32 %v592, %v606
        %v632 = vadd.f32 %v593, %v606
        %v633 = vadd.f32 %v594, %v606
        %v634 = vadd.f32 %v595, %v606
        %v635 = vadd.f32 %v596, %v606
        %v636 = vadd.f32 %v597, %v606
        %v637 = vadd.f32 %v598, %v606
        %v638 = vadd.f32 %v599, %v606
        %v639 = vadd.f32 %v600, %v606
        %v640 = vmax.f32 %v608, 0.0
        %v641 = vmax.f32 %v609, 0.0
        %v642 = vmax.f32 %v610, 0.0
        %v643 = vmax.f32 %v611, 0.0
        %v644 = vmax.f32 %v612, 0.0
        %v645 = vmax.f32 %v613, 0.0
        %v646 = vmax.f32 %v614, 0.0
        %v647 = vmax.f32 %v615, 0.0
        %v648 = vmax.f32 %v616, 0.0
        %v649 = vmax.f32 %v617, 0.0
        %v650 = vmax.f32 %v618, 0.0
        %v651 = vmax.f32 %v619, 0.0
        %v652 = vmax.f32 %v620, 0.0
        %v653 = vmax.f32 %v621, 0.0
        %v654 = vmax.f32 %v622, 0.0
        %v655 = vmax.f32 %v623, 0.0
        %v656 = vmax.f32 %v624, 0.0
        %v657 = vmax.f32 %v625, 0.0
        %v658 = vmax.f32 %v626, 0.0
        %v659 = vmax.f32 %v627, 0.0
        %v660 = vmax.f32 %v628, 0.0
        %v661 = vmax.f32 %v629, 0.0
        %v662 = vmax.f32 %v630, 0.0
        %v663 = vmax.f32 %v631, 0.0
        %v664 = vmax.f32 %v632, 0.0
        %v665 = vmax.f32 %v633, 0.0
        %v666 = vmax.f32 %v634, 0.0
        %v667 = vmax.f32 %v635, 0.0
        %v668 = vmax.f32 %v636, 0.0
        %v669 = vmax.f32 %v637, 0.0
        %v670 = vmax.f32 %v638, 0.0
        %v671 = vmax.f32 %v639, 0.0
        %672 = vst [vmem:[%s191] sm:$0xff] %v640
        %673 = vst [vmem:[%s191 + $0x8] sm:$0xff] %v641
        %674 = vst [vmem:[%s191 + $0x10] sm:$0xff] %v642
        %675 = vst [vmem:[%s191 + $0x18] sm:$0xff] %v643
        %676 = vst [vmem:[%s191 + $0x20] sm:$0xff] %v644
        %677 = vst [vmem:[%s191 + $0x28] sm:$0xff] %v645
        %678 = vst [vmem:[%s191 + $0x30] sm:$0xff] %v646
        %679 = vst [vmem:[%s191 + $0x38] sm:$0xff] %v647
        %680 = vst [vmem:[%s191 + $0x40] sm:$0xff] %v648
        %681 = vst [vmem:[%s191 + $0x48] sm:$0xff] %v649
        %682 = vst [vmem:[%s191 + $0x50] sm:$0xff] %v650
        %683 = vst [vmem:[%s191 + $0x58] sm:$0xff] %v651
        %684 = vst [vmem:[%s191 + $0x60] sm:$0xff] %v652
        %685 = vst [vmem:[%s191 + $0x68] sm:$0xff] %v653
        %686 = vst [vmem:[%s191 + $0x70] sm:$0xff] %v654
        %687 = vst [vmem:[%s191 + $0x78] sm:$0xff] %v655
        %688 = vst [vmem:[%s191 + $0x80] sm:$0xff] %v656
        %689 = vst [vmem:[%s191 + $0x88] sm:$0xff] %v657
        %690 = vst [vmem:[%s191 + $0x90] sm:$0xff] %v658
        %691 = vst [vmem:[%s191 + $0x98] sm:$0xff] %v659
        %692 = vst [vmem:[%s191 + $0xa0] sm:$0xff] %v660
        %693 = vst [vmem:[%s191 + $0xa8] sm:$0xff] %v661
        %694 = vst [vmem:[%s191 + $0xb0] sm:$0xff] %v662
        %695 = vst [vmem:[%s191 + $0xb8] sm:$0xff] %v663
        %696 = vst [vmem:[%s191 + $0xc0] sm:$0xff] %v664
        %697 = vst [vmem:[%s191 + $0xc8] sm:$0xff] %v665
        %698 = vst [vmem:[%s191 + $0xd0] sm:$0xff] %v666
        %699 = vst [vmem:[%s191 + $0xd8] sm:$0xff] %v667
        %700 = vst [vmem:[%s191 + $0xe0] sm:$0xff] %v668
        %701 = vst [vmem:[%s191 + $0xe8] sm:$0xff] %v669
        %702 = vst [vmem:[%s191 + $0xf0] sm:$0xff] %v670
        %703 = vst [vmem:[%s191 + $0xf8] sm:$0xff] %v671
        %s704 = sand.u32 %s115, 1
        %s705 = scalar_lea.sflag [#allocation3], %s704
        %s706 = sand.u32 %s115, 1
        %s707 = smul.addr %s706, 256
        %s708 = scalar_lea.vmem [#allocation2], %s707
        // Predicated region
        $region37: #{tpu_custom_call.1} parent=35 // pred_check
          %p709 = pneg %p125
        $region38: #{tpu_custom_call.1} parent=35 // pred_check_branch
          %711 = sbr.rel (%p709) target = $region40
        $region39: #{tpu_custom_call.1} parent=35 // pred_region
          %s712 = smul.u32 32, %s18
          %s714 = ssub.s32 4096, 4096
          %715 = vsyncadd %s705, %s714
          %s716 = smul.addr %s712, 128
          %s717 = scalar_lea.hbm %s4, %s716
          %s718 = sshll.u32 %s708, 4
          %s719 = int_to_ptr.vmem [resolvable:$true] %s718
          %724 = dma.vmem_to_hbm [thread:$0]  %s719, 4096, %s717, %s705, 128, 128, 8
        $region40: #{tpu_custom_call.1} parent=35 // pred_fallthru
          _
      $region36: #{tpu_custom_call.1} parent=5 // pred_fallthru
        _
      %p725 = scmp.le.s32.totalorder 2, %s13
      // Predicated region
      $region41: #{tpu_custom_call.1} parent=5 // pred_check
        %p726 = pneg %p725
      $region42: #{tpu_custom_call.1} parent=5 // pred_check_branch
        %728 = sbr.rel (%p726) target = $region44
      $region43: #{tpu_custom_call.1} parent=5 // pred_region
        %s729 = ssub.s32 %s13, 2
        // Predicated region
        $region45: #{tpu_custom_call.1} parent=43 // pred_check
          %p730 = pneg %p131
        $region46: #{tpu_custom_call.1} parent=43 // pred_check_branch
          %732 = sbr.rel (%p730) target = $region48
        $region47: #{tpu_custom_call.1} parent=43 // pred_region
          %s733 = sand.u32 %s116, 1
          %s734 = scalar_lea.sflag [#allocation3], %s733
          %s735 = sand.u32 %s116, 1
          %s736 = smul.addr %s735, 256
          %s737 = scalar_lea.vmem [#allocation2], %s736
          %738 = dma.done %s734, 4096
        $region48: #{tpu_custom_call.1} parent=43 // pred_fallthru
          _
      $region44: #{tpu_custom_call.1} parent=5 // pred_fallthru
        _
    $region6: #{tpu_custom_call.1} parent=1 // loop_footer
      %s17 = sadd.s32 1, %s13
    $region7: #{tpu_custom_call.1} parent=1 // loop_footer_branch
      %12 = sbr.rel target = $region3
    $region8: #{tpu_custom_call.1} parent=1 // loop_exit
      _
    %739 = vsyncpa [#allocation3], 1
    %s740 = scalar_lea.sflag [#allocation3], 1
    %741 = vsyncpa %s740, 1

</llo_original>
